<compile_context>
chip_gen: v7x
topology: tpu7x:2x2x1
jax: 0.10.0
libtpu: 0.0.40
codegen_flags: <defaults>
</compile_context>

<pallas_src>
import jax
import jax.numpy as jnp
from jax.experimental import pallas as pl
from jax.experimental.pallas import tpu as pltpu


def _sigmoid(z):
    # Single EUP op (tanh) per activation instead of exp + reciprocal.
    return 0.5 * jnp.tanh(0.5 * z) + 0.5


def _mlp_kernel(p_ref, x_ref, o_ref):
    # p_ref: (16,) f32 in SMEM (scalar-prefetched packed weights/biases)
    #   [0:4]   w1 (in,out) row-major   [4:6]   b1
    #   [6:10]  w2 (in,out) row-major   [10:12] b2
    #   [12:14] w3[:,0]                 [14]    b3
    # x_ref: (2, TR, 128) f32  -- batch dense on sublanes AND lanes
    # o_ref: (TR, 128) f32
    x0 = x_ref[0]                                        # (TR, 128)
    x1 = x_ref[1]                                        # (TR, 128)

    # Layer 1: Linear(2,2) + Sigmoid, fully unrolled on the VPU/EUP.
    h1_0 = _sigmoid(p_ref[0] * x0 + p_ref[2] * x1 + p_ref[4])
    h1_1 = _sigmoid(p_ref[1] * x0 + p_ref[3] * x1 + p_ref[5])

    # Layer 2: Linear(2,2) + Sigmoid.
    h2_0 = _sigmoid(p_ref[6] * h1_0 + p_ref[8] * h1_1 + p_ref[10])
    h2_1 = _sigmoid(p_ref[7] * h1_0 + p_ref[9] * h1_1 + p_ref[11])

    # Layer 3: Linear(2,1). Output is already f32 == o_ref.dtype, no cast.
    o_ref[...] = p_ref[12] * h2_0 + p_ref[13] * h2_1 + p_ref[14]


def on_topic_regression_forward(x, params, *, tile_rows=2048):
    """Forward pass of OnTopicRegressionNetwork.

    x:      (B, 2) float32
    params: dict with w1(2,2), b1(1,2), w2(2,2), b2(1,2), w3(2,1), b3(1,1)
            (weights stored pre-transposed as (in_features, out_features))
    returns (B, 1) float32
    """
    B = x.shape[0]

    # Pack all 15 parameters into one small f32 array for SMEM scalar prefetch.
    packed = jnp.concatenate([
        params["w1"].reshape(-1), params["b1"].reshape(-1),
        params["w2"].reshape(-1), params["b2"].reshape(-1),
        params["w3"].reshape(-1), params["b3"].reshape(-1),
        jnp.zeros((1,), jnp.float32),          # pad 15 -> 16
    ]).astype(jnp.float32)

    # Batch dense on (sublane, lane): rows of 128 elements each.
    rows = max(8, (B + 127) // 128)

    # Tile: multiple of 8 sublanes, clamped to the batch; when the batch is
    # big enough, cap at ~half the rows so the "parallel" grid has >= 2 steps
    # (keeps both v7x TensorCores busy).
    tr = min(tile_rows, ((rows + 7) // 8) * 8)
    if rows > 16:
        tr = min(tr, ((rows + 15) // 16) * 8)  # ~ceil(rows/2), multiple of 8
    tr = max(8, (tr // 8) * 8)

    rows_p = ((rows + tr - 1) // tr) * tr      # grid divides evenly
    bp = rows_p * 128

    xt = jnp.zeros((2, bp), jnp.float32).at[:, :B].set(
        x.astype(jnp.float32).T).reshape(2, rows_p, 128)

    grid = (rows_p // tr,)

    # Double-buffered (2,tr,128) input + (tr,128) output, f32, plus headroom.
    tile_bytes = 3 * tr * 128 * 4
    vmem_bytes = int(min(64 << 20, max(8 << 20, 4 * tile_bytes)))

    out_t = pl.pallas_call(
        _mlp_kernel,
        out_shape=jax.ShapeDtypeStruct((rows_p, 128), jnp.float32),
        grid_spec=pltpu.PrefetchScalarGridSpec(
            num_scalar_prefetch=1,
            grid=grid,
            in_specs=[pl.BlockSpec((2, tr, 128), lambda i, p: (0, i, 0))],
            out_specs=pl.BlockSpec((tr, 128), lambda i, p: (i, 0)),
        ),
        compiler_params=pltpu.CompilerParams(
            dimension_semantics=("parallel",),
            vmem_limit_bytes=vmem_bytes,
        ),
        cost_estimate=pl.CostEstimate(
            flops=20 * bp,            # ~20 mul/add per batch element
            transcendentals=4 * bp,   # 4 tanh per batch element
            bytes_accessed=12 * bp + packed.size * 4,
        ),
    )(packed, xt)

    return out_t.reshape(bp)[:B].reshape(B, 1)


def init_params(key):
    """Deterministic synthetic init matching the PyTorch module's shapes.

    PyTorch Linear weights are (out, in); we store them transposed as (in, out).
    """
    ks = jax.random.split(key, 6)
    w1 = jax.random.uniform(ks[0], (2, 2), jnp.float32, -0.7, 0.7)
    b1 = jax.random.uniform(ks[1], (1, 2), jnp.float32, -0.7, 0.7)
    w2 = jax.random.uniform(ks[2], (2, 2), jnp.float32, -0.7, 0.7)
    b2 = jax.random.uniform(ks[3], (1, 2), jnp.float32, -0.7, 0.7)
    w3 = jax.random.uniform(ks[4], (2, 1), jnp.float32, -0.7, 0.7)
    b3 = jax.random.uniform(ks[5], (1, 1), jnp.float32, -0.7, 0.7)
    return {"w1": w1, "b1": b1, "w2": w2, "b2": b2, "w3": w3, "b3": b3}


def _reference_forward(x, p):
    sig = lambda z: 1.0 / (1.0 + jnp.exp(-z))
    h1 = sig(x @ p["w1"] + p["b1"])
    h2 = sig(h1 @ p["w2"] + p["b2"])
    return h2 @ p["w3"] + p["b3"]


if __name__ == "__main__":
    key = jax.random.PRNGKey(0)
    k_params, k_x = jax.random.split(key)

    params = init_params(k_params)
    B = 8  # small batch; input features = 2 as implied by Linear(2, 2)
    x = jax.random.normal(k_x, (B, 2), jnp.float32)

    out = on_topic_regression_forward(x, params)
    out = jax.block_until_ready(out)

    ref = _reference_forward(x, params)
    assert out.shape == (B, 1)
    assert jnp.allclose(out, ref, atol=1e-5, rtol=1e-5)

    print("KERNEL_OK")
</pallas_src>

<mosaic_0001>
module attributes {stable_mosaic.version = 11 : i64} {
  func.func @_mlp_kernel(%arg0: i32, %arg1: memref<16xf32, #tpu.memory_space<smem>>, %arg2: memref<2x8x128xf32, #tpu.memory_space<vmem>>, %arg3: memref<8x128xf32, #tpu.memory_space<vmem>>) attributes {dimension_semantics = [#tpu.dimension_semantics<parallel>], iteration_bounds = array<i64: 1>, scalar_prefetch = 1 : i64, scratch_operands = 0 : i64, tpu.core_type = #tpu.core_type<tc>, window_params = [{transform_indices = @transform_0, window_bounds = array<i64: 2, 8, 128>}, {transform_indices = @transform_1, window_bounds = array<i64: 8, 128>}]} {
    %c0 = arith.constant 0 : index
    %c0_0 = arith.constant 0 : index
    %c0_1 = arith.constant 0 : index
    %0 = vector.load %arg2[%c0, %c0_0, %c0_1] : memref<2x8x128xf32, #tpu.memory_space<vmem>>, vector<1x8x128xf32>
    %1 = vector.shape_cast %0 : vector<1x8x128xf32> to vector<8x128xf32>
    %c1 = arith.constant 1 : index
    %c0_2 = arith.constant 0 : index
    %c0_3 = arith.constant 0 : index
    %2 = vector.load %arg2[%c1, %c0_2, %c0_3] : memref<2x8x128xf32, #tpu.memory_space<vmem>>, vector<1x8x128xf32>
    %3 = vector.shape_cast %2 : vector<1x8x128xf32> to vector<8x128xf32>
    %c0_4 = arith.constant 0 : index
    %4 = memref.load %arg1[%c0_4] : memref<16xf32, #tpu.memory_space<smem>>
    %5 = vector.broadcast %4 : f32 to vector<8x128xf32>
    %6 = arith.mulf %5, %1 : vector<8x128xf32>
    %c2 = arith.constant 2 : index
    %7 = memref.load %arg1[%c2] : memref<16xf32, #tpu.memory_space<smem>>
    %8 = vector.broadcast %7 : f32 to vector<8x128xf32>
    %9 = arith.mulf %8, %3 : vector<8x128xf32>
    %10 = arith.addf %6, %9 : vector<8x128xf32>
    %c4 = arith.constant 4 : index
    %11 = memref.load %arg1[%c4] : memref<16xf32, #tpu.memory_space<smem>>
    %12 = vector.broadcast %11 : f32 to vector<8x128xf32>
    %13 = arith.addf %10, %12 : vector<8x128xf32>
    %cst = arith.constant 5.000000e-01 : f32
    %14 = vector.broadcast %cst : f32 to vector<8x128xf32>
    %15 = arith.mulf %14, %13 : vector<8x128xf32>
    %16 = math.tanh %15 : vector<8x128xf32>
    %cst_5 = arith.constant 5.000000e-01 : f32
    %17 = vector.broadcast %cst_5 : f32 to vector<8x128xf32>
    %18 = arith.mulf %17, %16 : vector<8x128xf32>
    %cst_6 = arith.constant 5.000000e-01 : f32
    %19 = vector.broadcast %cst_6 : f32 to vector<8x128xf32>
    %20 = arith.addf %18, %19 : vector<8x128xf32>
    %c1_7 = arith.constant 1 : index
    %21 = memref.load %arg1[%c1_7] : memref<16xf32, #tpu.memory_space<smem>>
    %22 = vector.broadcast %21 : f32 to vector<8x128xf32>
    %23 = arith.mulf %22, %1 : vector<8x128xf32>
    %c3 = arith.constant 3 : index
    %24 = memref.load %arg1[%c3] : memref<16xf32, #tpu.memory_space<smem>>
    %25 = vector.broadcast %24 : f32 to vector<8x128xf32>
    %26 = arith.mulf %25, %3 : vector<8x128xf32>
    %27 = arith.addf %23, %26 : vector<8x128xf32>
    %c5 = arith.constant 5 : index
    %28 = memref.load %arg1[%c5] : memref<16xf32, #tpu.memory_space<smem>>
    %29 = vector.broadcast %28 : f32 to vector<8x128xf32>
    %30 = arith.addf %27, %29 : vector<8x128xf32>
    %cst_8 = arith.constant 5.000000e-01 : f32
    %31 = vector.broadcast %cst_8 : f32 to vector<8x128xf32>
    %32 = arith.mulf %31, %30 : vector<8x128xf32>
    %33 = math.tanh %32 : vector<8x128xf32>
    %cst_9 = arith.constant 5.000000e-01 : f32
    %34 = vector.broadcast %cst_9 : f32 to vector<8x128xf32>
    %35 = arith.mulf %34, %33 : vector<8x128xf32>
    %cst_10 = arith.constant 5.000000e-01 : f32
    %36 = vector.broadcast %cst_10 : f32 to vector<8x128xf32>
    %37 = arith.addf %35, %36 : vector<8x128xf32>
    %c6 = arith.constant 6 : index
    %38 = memref.load %arg1[%c6] : memref<16xf32, #tpu.memory_space<smem>>
    %39 = vector.broadcast %38 : f32 to vector<8x128xf32>
    %40 = arith.mulf %39, %20 : vector<8x128xf32>
    %c8 = arith.constant 8 : index
    %41 = memref.load %arg1[%c8] : memref<16xf32, #tpu.memory_space<smem>>
    %42 = vector.broadcast %41 : f32 to vector<8x128xf32>
    %43 = arith.mulf %42, %37 : vector<8x128xf32>
    %44 = arith.addf %40, %43 : vector<8x128xf32>
    %c10 = arith.constant 10 : index
    %45 = memref.load %arg1[%c10] : memref<16xf32, #tpu.memory_space<smem>>
    %46 = vector.broadcast %45 : f32 to vector<8x128xf32>
    %47 = arith.addf %44, %46 : vector<8x128xf32>
    %cst_11 = arith.constant 5.000000e-01 : f32
    %48 = vector.broadcast %cst_11 : f32 to vector<8x128xf32>
    %49 = arith.mulf %48, %47 : vector<8x128xf32>
    %50 = math.tanh %49 : vector<8x128xf32>
    %cst_12 = arith.constant 5.000000e-01 : f32
    %51 = vector.broadcast %cst_12 : f32 to vector<8x128xf32>
    %52 = arith.mulf %51, %50 : vector<8x128xf32>
    %cst_13 = arith.constant 5.000000e-01 : f32
    %53 = vector.broadcast %cst_13 : f32 to vector<8x128xf32>
    %54 = arith.addf %52, %53 : vector<8x128xf32>
    %c7 = arith.constant 7 : index
    %55 = memref.load %arg1[%c7] : memref<16xf32, #tpu.memory_space<smem>>
    %56 = vector.broadcast %55 : f32 to vector<8x128xf32>
    %57 = arith.mulf %56, %20 : vector<8x128xf32>
    %c9 = arith.constant 9 : index
    %58 = memref.load %arg1[%c9] : memref<16xf32, #tpu.memory_space<smem>>
    %59 = vector.broadcast %58 : f32 to vector<8x128xf32>
    %60 = arith.mulf %59, %37 : vector<8x128xf32>
    %61 = arith.addf %57, %60 : vector<8x128xf32>
    %c11 = arith.constant 11 : index
    %62 = memref.load %arg1[%c11] : memref<16xf32, #tpu.memory_space<smem>>
    %63 = vector.broadcast %62 : f32 to vector<8x128xf32>
    %64 = arith.addf %61, %63 : vector<8x128xf32>
    %cst_14 = arith.constant 5.000000e-01 : f32
    %65 = vector.broadcast %cst_14 : f32 to vector<8x128xf32>
    %66 = arith.mulf %65, %64 : vector<8x128xf32>
    %67 = math.tanh %66 : vector<8x128xf32>
    %cst_15 = arith.constant 5.000000e-01 : f32
    %68 = vector.broadcast %cst_15 : f32 to vector<8x128xf32>
    %69 = arith.mulf %68, %67 : vector<8x128xf32>
    %cst_16 = arith.constant 5.000000e-01 : f32
    %70 = vector.broadcast %cst_16 : f32 to vector<8x128xf32>
    %71 = arith.addf %69, %70 : vector<8x128xf32>
    %c12 = arith.constant 12 : index
    %72 = memref.load %arg1[%c12] : memref<16xf32, #tpu.memory_space<smem>>
    %73 = vector.broadcast %72 : f32 to vector<8x128xf32>
    %74 = arith.mulf %73, %54 : vector<8x128xf32>
    %c13 = arith.constant 13 : index
    %75 = memref.load %arg1[%c13] : memref<16xf32, #tpu.memory_space<smem>>
    %76 = vector.broadcast %75 : f32 to vector<8x128xf32>
    %77 = arith.mulf %76, %71 : vector<8x128xf32>
    %78 = arith.addf %74, %77 : vector<8x128xf32>
    %c14 = arith.constant 14 : index
    %79 = memref.load %arg1[%c14] : memref<16xf32, #tpu.memory_space<smem>>
    %80 = vector.broadcast %79 : f32 to vector<8x128xf32>
    %81 = arith.addf %78, %80 : vector<8x128xf32>
    %c0_17 = arith.constant 0 : index
    %c0_18 = arith.constant 0 : index
    %82 = vector.load %arg3[%c0_17, %c0_18] : memref<8x128xf32, #tpu.memory_space<vmem>>, vector<8x128xf32>
    tpu.vector_store %arg3[%c0_17, %c0_18], %81 {strides = array<i32>} : memref<8x128xf32, #tpu.memory_space<vmem>>, vector<8x128xf32>,
    return
  }
  func.func @transform_0(%arg0: i32, %arg1: memref<16xf32, #tpu.memory_space<smem>>) -> (i32, i32, i32) {
    %c0_i32 = arith.constant 0 : i32
    %c0_i32_0 = arith.constant 0 : i32
    %c0_i32_1 = arith.constant 0 : i32
    return %c0_i32, %arg0, %c0_i32_0 : i32, i32, i32
  }
  func.func @transform_1(%arg0: i32, %arg1: memref<16xf32, #tpu.memory_space<smem>>) -> (i32, i32) {
    %c0_i32 = arith.constant 0 : i32
    %c0_i32_0 = arith.constant 0 : i32
    return %arg0, %c0_i32 : i32, i32
  }
}

</mosaic_0001>

<llo_original>
// kernel: tpu_custom_call.1
$region0: #{tpu_custom_call.1}
  #allocation0 [shape = 'u32[]', space=smem, size = 0x4, offset = 0x4, fixed_abs, tag = 'smem constant byte address 0x4 - core index']
  #allocation1 [shape = 'u32[144,128]{1,0:T(1,128)}', space=vmem, size = 0x12000, scoped, tag = 'internal scratch']
  #allocation2 [shape = 's32[1]{0}', space=sflag, size = 0x4, scoped, tag = 'scoped memory for tpu_custom_call.1']
  #allocation3 [shape = 'u8[512]{0}', space=smem, size = 0x200, scoped, tag = 'prefetched SMEM operand 0']
  %s0 = inlined_call_operand.hbm [shape: f32[16], index: 0, kind: input, shape index: {}]
  %s1 = inlined_call_operand.hbm [shape: f32[2,8,128], index: 1, kind: input, shape index: {}]
  %s2 = inlined_call_operand.hbm [shape: f32[8,128], index: 2, kind: output, shape index: {}]
  %s3 = sld [smem:[#allocation0]]
  $region18: #{tpu_custom_call.1} parent=0
    _
  %s5 = ssub.s32 1, %s3
  %s6 = scalar_select 0, %s5, %s3
  %8 = dma.hbm_to_smem %s0, 16, [#allocation3], [#allocation2]
  %9 = dma.done [#allocation2], 16
  %10 = sfence
  $region1: #{tpu_custom_call.1} parent=0
    #allocation4 [shape = 'u8[8192]{0}', space=vmem, size = 0x2000, scoped, tag = 'input window, operand 1, single buffered']
    #allocation5 [shape = 's32[1]{0}', space=sflag, size = 0x4, scoped, tag = 'scoped memory for tpu_custom_call.1']
    #allocation6 [shape = 's32[1]{0}', space=sflag, size = 0x4, scoped, tag = 'scoped memory for tpu_custom_call.1']
    #allocation7 [shape = 'u8[4096]{0}', space=vmem, size = 0x1000, scoped, tag = 'output window, operand 0, single buffered']
    %11 = vsyncpa [#allocation5], 0
    %12 = vsyncpa [#allocation6], 0
    // Predicated region
    $region2: #{tpu_custom_call.1} parent=1 // pred_check
      _
    $region3: #{tpu_custom_call.1} parent=1 // pred_check_branch
      %14 = sbr.rel (0) target = $region5
    $region4: #{tpu_custom_call.1} parent=1 // pred_region
      %s16 = ssub.s32 256, 256
      %17 = vsyncadd [#allocation5], %s16
      %s18 = sshll.u32 [#allocation4], 4
      %s19 = int_to_ptr.vmem [resolvable:$true] %s18
      %24 = dma.hbm_to_vmem [thread:$0]  %s1, 256, %s19, [#allocation5], 128, 128, 8
    $region5: #{tpu_custom_call.1} parent=1 // pred_fallthru
      _
    // Predicated region
    $region6: #{tpu_custom_call.1} parent=1 // pred_check
      _
    $region7: #{tpu_custom_call.1} parent=1 // pred_check_branch
      %26 = sbr.rel (0) target = $region9
    $region8: #{tpu_custom_call.1} parent=1 // pred_region
      %27 = dma.done [#allocation5], 256
    $region9: #{tpu_custom_call.1} parent=1 // pred_fallthru
      _
    %v28 = vld [vmem:[#allocation4] sm:$0xff]
    %s29 = scalar_lea.vmem [#allocation4], 8
    %v30 = vld [vmem:[%s29] sm:$0xff]
    %s31 = sld [smem:[#allocation3]]
    %v32 = vstv %s31
    %v33 = vmul.f32 %v32, %v28
    %s34 = sld [smem:[#allocation3 + $0x2]]
    %v35 = vstv %s34
    %v36 = vmul.f32 %v35, %v30
    %v37 = vadd.f32 %v33, %v36
    %s38 = sld [smem:[#allocation3 + $0x4]]
    %v39 = vstv %s38
    %v40 = vadd.f32 %v37, %v39
    %v41 = vmul.f32 %v40, 0.5
    %v42 = vtanh.pop %v41
    %v43 = vmul.f32 %v42, 0.5
    %v44 = vadd.f32 %v43, 0.5
    %s45 = sld [smem:[#allocation3 + $0x1]]
    %v46 = vstv %s45
    %v47 = vmul.f32 %v46, %v28
    %s48 = sld [smem:[#allocation3 + $0x3]]
    %v49 = vstv %s48
    %v50 = vmul.f32 %v49, %v30
    %v51 = vadd.f32 %v47, %v50
    %s52 = sld [smem:[#allocation3 + $0x5]]
    %v53 = vstv %s52
    %v54 = vadd.f32 %v51, %v53
    %v55 = vmul.f32 %v54, 0.5
    %v56 = vtanh.pop %v55
    %v57 = vmul.f32 %v56, 0.5
    %v58 = vadd.f32 %v57, 0.5
    %s59 = sld [smem:[#allocation3 + $0x6]]
    %v60 = vstv %s59
    %v61 = vmul.f32 %v60, %v44
    %s62 = sld [smem:[#allocation3 + $0x8]]
    %v63 = vstv %s62
    %v64 = vmul.f32 %v63, %v58
    %v65 = vadd.f32 %v61, %v64
    %s66 = sld [smem:[#allocation3 + $0xa]]
    %v67 = vstv %s66
    %v68 = vadd.f32 %v65, %v67
    %v69 = vmul.f32 %v68, 0.5
    %v70 = vtanh.pop %v69
    %v71 = vmul.f32 %v70, 0.5
    %v72 = vadd.f32 %v71, 0.5
    %s73 = sld [smem:[#allocation3 + $0x7]]
    %v74 = vstv %s73
    %v75 = vmul.f32 %v74, %v44
    %s76 = sld [smem:[#allocation3 + $0x9]]
    %v77 = vstv %s76
    %v78 = vmul.f32 %v77, %v58
    %v79 = vadd.f32 %v75, %v78
    %s80 = sld [smem:[#allocation3 + $0xb]]
    %v81 = vstv %s80
    %v82 = vadd.f32 %v79, %v81
    %v83 = vmul.f32 %v82, 0.5
    %v84 = vtanh.pop %v83
    %v85 = vmul.f32 %v84, 0.5
    %v86 = vadd.f32 %v85, 0.5
    %s87 = sld [smem:[#allocation3 + $0xc]]
    %v88 = vstv %s87
    %v89 = vmul.f32 %v88, %v72
    %s90 = sld [smem:[#allocation3 + $0xd]]
    %v91 = vstv %s90
    %v92 = vmul.f32 %v91, %v86
    %v93 = vadd.f32 %v89, %v92
    %s94 = sld [smem:[#allocation3 + $0xe]]
    %v95 = vstv %s94
    %v96 = vadd.f32 %v93, %v95
    %97 = vst [vmem:[#allocation7] sm:$0xff] %v96
    // Predicated region
    $region10: #{tpu_custom_call.1} parent=1 // pred_check
      _
    $region11: #{tpu_custom_call.1} parent=1 // pred_check_branch
      %99 = sbr.rel (0) target = $region13
    $region12: #{tpu_custom_call.1} parent=1 // pred_region
      %s101 = ssub.s32 128, 128
      %102 = vsyncadd [#allocation6], %s101
      %s104 = sshll.u32 [#allocation7], 4
      %s105 = int_to_ptr.vmem [resolvable:$true] %s104
      %107 = dma.vmem_to_hbm [thread:$0]  %s105, 128, %s2, [#allocation6]
    $region13: #{tpu_custom_call.1} parent=1 // pred_fallthru
      _
    // Predicated region
    $region14: #{tpu_custom_call.1} parent=1 // pred_check
      _
    $region15: #{tpu_custom_call.1} parent=1 // pred_check_branch
      %109 = sbr.rel (0) target = $region17
    $region16: #{tpu_custom_call.1} parent=1 // pred_region
      %110 = dma.done [#allocation6], 128
    $region17: #{tpu_custom_call.1} parent=1 // pred_fallthru
      _
    %111 = vsyncpa [#allocation5], 1
    %112 = vsyncpa [#allocation6], 1

</llo_original>
